<compile_context>
chip_gen: v5e
topology: v5e:2x2
jax: 0.10.0
libtpu: 0.0.40
codegen_flags: <defaults>
</compile_context>

<pallas_src>
import functools
import math

import numpy as np
import jax
import jax.numpy as jnp
from jax.experimental import pallas as pl
from jax.experimental.pallas import tpu as pltpu

EPS = 1e-6

# Sobel taps used by the PyTorch module (F.conv2d = cross-correlation).
KERNEL_V = ((-1.0, 0.0, 1.0),
            (-2.0, 0.0, 2.0),
            (-1.0, 0.0, 1.0))
KERNEL_H = ((-1.0, -2.0, -1.0),
            ( 0.0,  0.0,  0.0),
            ( 1.0,  2.0,  1.0))


def _round_up(n, m):
    return ((n + m - 1) // m) * m


# --------------------------------------------------------------------------
# Small/medium planes: whole flattened plane on the lane axis, planes on
# sublanes.  All +/-1 column and +/-1 row shifts are lane rolls (XLU slot),
# so rows of the block never mix -> partial last blocks are safe.
# --------------------------------------------------------------------------
def _sobel_flat_kernel(x_ref, m_ref, o_ref, *, width):
    """x_ref: (BP, HWp) native dtype; m_ref: (8, HWp) f32 masks; o_ref f32."""
    x = x_ref[...].astype(jnp.float32)
    hwp = x.shape[-1]

    m = m_ref[...]
    nfc = m[0:1, :]   # 0 where image col == 0      (kills roll wrap = zero pad)
    nlc = m[1:2, :]   # 0 where image col == W-1
    nfr = m[2:3, :]   # 0 on the first image row
    nlr = m[3:4, :]   # 0 on the last image row

    # Horizontal (column) pass: +/-1 column == +/-1 lane.
    xl = pltpu.roll(x, 1, axis=1) * nfc            # x[., j-1]
    xr = pltpu.roll(x, hwp - 1, axis=1) * nlc      # x[., j+1]
    d = xr - xl                                    # [-1, 0, 1]
    s = (x + x) + (xl + xr)                        # [ 1, 2, 1]

    # Vertical (row) pass: +/-1 row == +/-W lanes on the flattened plane.
    # gv first so the d-rolls die before the s-rolls are materialised.
    gv = (pltpu.roll(d, width, axis=1) * nfr + (d + d)
          + pltpu.roll(d, hwp - width, axis=1) * nlr)
    gh = (pltpu.roll(s, hwp - width, axis=1) * nlr
          - pltpu.roll(s, width, axis=1) * nfr)

    o_ref[...] = jnp.sqrt(gv * gv + gh * gh + jnp.float32(EPS))


# --------------------------------------------------------------------------
# Large planes: image rows on sublanes, columns on lanes.  Each block holds
# WHOLE planes, so the sublane rolls never need a halo from another block.
# Vertical rolls cross rows, so jnp.where (select) is used instead of
# multiply-by-mask to keep possible garbage from partial blocks out.
# --------------------------------------------------------------------------
def _sobel_rows_kernel(x_ref, o_ref, *, width, height):
    x = x_ref[...].astype(jnp.float32)
    br, wp = x.shape

    lane = jax.lax.broadcasted_iota(jnp.int32, (br, wp), 1)
    rrow = jax.lax.broadcasted_iota(jnp.int32, (br, wp), 0) % height
    not_first = rrow != 0
    not_last = rrow != height - 1

    xl = jnp.where(lane == 0, 0.0, pltpu.roll(x, 1, axis=1))
    xr = jnp.where(lane == width - 1, 0.0, pltpu.roll(x, wp - 1, axis=1))
    d = xr - xl
    s = (x + x) + (xl + xr)

    gv = (jnp.where(not_first, pltpu.roll(d, 1, axis=0), 0.0) + (d + d)
          + jnp.where(not_last, pltpu.roll(d, br - 1, axis=0), 0.0))
    gh = (jnp.where(not_last, pltpu.roll(s, br - 1, axis=0), 0.0)
          - jnp.where(not_first, pltpu.roll(s, 1, axis=0), 0.0))

    o_ref[...] = jnp.sqrt(gv * gv + gh * gh + jnp.float32(EPS))


def get_sobel(x, *, block_bytes=1 << 20, force_rows=False):
    """x: (N, C, H, W) -> (N, C, H, W) float32 Sobel magnitude."""
    N, C, H, W = x.shape
    P, HW = N * C, H * W
    itemsize = jnp.dtype(x.dtype).itemsize
    gran = 8 * max(1, 4 // itemsize)          # sublane multiple for this dtype

    hwp = _round_up(HW, 128)
    # Flat path only while an 8-plane f32 block stays at ~<=2 MiB.
    use_flat = (not force_rows) and (8 * hwp * 4 <= 2 * (1 << 20))

    if use_flat:
        x2 = x.reshape(P, HW)
        if hwp != HW:
            x2 = jnp.pad(x2, ((0, 0), (0, hwp - HW)))

        # 0/1 border masks from the *unpadded* plane geometry, built once.
        f = np.arange(hwp)
        col = f % W
        mask = np.zeros((8, hwp), np.float32)
        mask[0] = col != 0
        mask[1] = col != W - 1
        mask[2] = f >= W
        mask[3] = f < HW - W
        mask = jnp.asarray(mask)

        # Planes per grid step: ~block_bytes of f32 output, but never a single
        # giant step (>=4 steps when P allows -> pipelining + megacore).
        if P <= gran:
            bp = P                                    # full extent: always legal
        else:
            bp = max(gran, (block_bytes // (hwp * 4)) // gran * gran)
            if P >= 4 * gran:
                bp = min(bp, max(gran, (P // 4) // gran * gran))
            elif P >= 2 * gran:
                bp = min(bp, gran)
            bp = min(bp, P)
        grid = (pl.cdiv(P, bp),)

        # VMEM: double-buffered in+out, ~8 block-sized f32 temporaries, mask.
        est = bp * hwp * (2 * itemsize + 2 * 4 + 8 * 4) + 2 * 8 * hwp * 4
        vmem_limit = int(min(max(est * 5 // 4, 16 << 20), 48 << 20))

        out = pl.pallas_call(
            functools.partial(_sobel_flat_kernel, width=W),
            out_shape=jax.ShapeDtypeStruct((P, hwp), jnp.float32),
            grid_spec=pltpu.PrefetchScalarGridSpec(
                num_scalar_prefetch=0,
                grid=grid,
                in_specs=[pl.BlockSpec((bp, hwp), lambda i: (i, 0)),
                          pl.BlockSpec((8, hwp), lambda i: (0, 0))],  # mask: fetched once
                out_specs=pl.BlockSpec((bp, hwp), lambda i: (i, 0)),
            ),
            compiler_params=pltpu.CompilerParams(
                dimension_semantics=("parallel",),
                vmem_limit_bytes=vmem_limit),
        )(x2, mask)
        if hwp != HW:
            out = out[:, :HW]
        return out.reshape(N, C, H, W)

    # ---------------- large-plane path: (P*H, W) row blocks -----------------
    wp = _round_up(W, 128)
    rows = P * H
    x2 = x.reshape(rows, W)
    if wp != W:
        x2 = jnp.pad(x2, ((0, 0), (0, wp - W)))

    # Planes per block: block rows must be a multiple of H (no halo needed)
    # and of the sublane granularity.
    ppb_step = gran // math.gcd(H, gran)
    ppb = max(ppb_step,
              (max(1, block_bytes // (H * wp * 4)) // ppb_step) * ppb_step)
    ppb = min(ppb, P)
    if P > ppb_step and ppb >= P:                 # keep >=2 grid steps if possible
        ppb = max(ppb_step, (P // 2 // ppb_step) * ppb_step)
    br = ppb * H
    if br >= rows:
        br = rows
    grid = (pl.cdiv(rows, br),)
    # TODO(synk): a single plane so large that even a ppb_step*H row block
    # overflows VMEM needs row tiling with a 1-row halo (manual DMA).

    est = br * wp * (2 * itemsize + 2 * 4 + 8 * 4)
    vmem_limit = int(min(max(est * 5 // 4, 16 << 20), 48 << 20))

    out = pl.pallas_call(
        functools.partial(_sobel_rows_kernel, width=W, height=H),
        out_shape=jax.ShapeDtypeStruct((rows, wp), jnp.float32),
        grid_spec=pltpu.PrefetchScalarGridSpec(
            num_scalar_prefetch=0,
            grid=grid,
            in_specs=[pl.BlockSpec((br, wp), lambda i: (i, 0))],
            out_specs=pl.BlockSpec((br, wp), lambda i: (i, 0)),
        ),
        compiler_params=pltpu.CompilerParams(
            dimension_semantics=("parallel",),
            vmem_limit_bytes=vmem_limit),
    )(x2)
    if wp != W:
        out = out[:, :W]
    return out.reshape(N, C, H, W)


def _reference(x):
    """Plain-JAX reference matching the PyTorch forward exactly."""
    x = x.astype(jnp.float32)
    N, C, H, W = x.shape
    kv = jnp.asarray(KERNEL_V, jnp.float32)[None, None]
    kh = jnp.asarray(KERNEL_H, jnp.float32)[None, None]
    xi = x.reshape(N * C, 1, H, W)
    dn = jax.lax.conv_dimension_numbers(xi.shape, kv.shape,
                                        ("NCHW", "OIHW", "NCHW"))
    v = jax.lax.conv_general_dilated(xi, kv, (1, 1), ((1, 1), (1, 1)),
                                     dimension_numbers=dn)
    h = jax.lax.conv_general_dilated(xi, kh, (1, 1), ((1, 1), (1, 1)),
                                     dimension_numbers=dn)
    return jnp.sqrt(v * v + h * h + EPS).reshape(N, C, H, W)


if __name__ == "__main__":
    # Primary shape from the module spec.
    x = jax.random.normal(jax.random.PRNGKey(0), (2, 4, 16, 16),
                          dtype=jnp.float32)
    out = jax.block_until_ready(get_sobel(x))
    assert out.shape == x.shape and out.dtype == jnp.float32
    ref = _reference(x)
    assert jnp.allclose(out, ref, atol=1e-5, rtol=1e-5), float(
        jnp.max(jnp.abs(out - ref)))

    # Partial last block: P = 20 planes, bp = 8 -> 3 grid steps.
    x2 = jax.random.normal(jax.random.PRNGKey(1), (4, 5, 16, 16),
                           dtype=jnp.float32)
    o2 = jax.block_until_ready(get_sobel(x2))
    assert jnp.allclose(o2, _reference(x2), atol=1e-5, rtol=1e-5)

    # Lane padding (H*W = 120 -> 128) and P < 8 sublanes.
    x3 = jax.random.normal(jax.random.PRNGKey(2), (1, 3, 10, 12),
                           dtype=jnp.float32)
    o3 = jax.block_until_ready(get_sobel(x3))
    assert jnp.allclose(o3, _reference(x3), atol=1e-5, rtol=1e-5)

    # Large-plane (row-tiled) path, forced at a small shape.
    x4 = jax.random.normal(jax.random.PRNGKey(3), (1, 2, 16, 128),
                           dtype=jnp.float32)
    o4 = jax.block_until_ready(get_sobel(x4, force_rows=True))
    assert jnp.allclose(o4, _reference(x4), atol=1e-5, rtol=1e-5)

    print("KERNEL_OK")
</pallas_src>

<mosaic_0001>
module attributes {stable_mosaic.version = 11 : i64} {
  func.func @_sobel_flat_kernel(%arg0: i32, %arg1: memref<8x256xf32, #tpu.memory_space<vmem>>, %arg2: memref<8x256xf32, #tpu.memory_space<vmem>>, %arg3: memref<8x256xf32, #tpu.memory_space<vmem>>) attributes {dimension_semantics = [#tpu.dimension_semantics<parallel>], iteration_bounds = array<i64: 1>, scalar_prefetch = 0 : i64, scratch_operands = 0 : i64, tpu.core_type = #tpu.core_type<tc>, window_params = [{transform_indices = @transform_0, window_bounds = array<i64: 8, 256>}, {pipeline_mode = #tpu.pipeline_mode<synchronous>, transform_indices = @transform_1, window_bounds = array<i64: 8, 256>}, {transform_indices = @transform_2, window_bounds = array<i64: 8, 256>}]} {
    %c0 = arith.constant 0 : index
    %c0_0 = arith.constant 0 : index
    %0 = vector.load %arg1[%c0, %c0_0] : memref<8x256xf32, #tpu.memory_space<vmem>>, vector<8x256xf32>
    %c0_1 = arith.constant 0 : index
    %c0_2 = arith.constant 0 : index
    %1 = vector.load %arg2[%c0_1, %c0_2] : memref<8x256xf32, #tpu.memory_space<vmem>>, vector<8x256xf32>
    %2 = vector.extract_strided_slice %1 {offsets = [0, 0], sizes = [1, 256], strides = [1, 1]} : vector<8x256xf32> to vector<1x256xf32>
    %3 = vector.extract_strided_slice %1 {offsets = [1, 0], sizes = [1, 256], strides = [1, 1]} : vector<8x256xf32> to vector<1x256xf32>
    %4 = vector.extract_strided_slice %1 {offsets = [2, 0], sizes = [1, 256], strides = [1, 1]} : vector<8x256xf32> to vector<1x256xf32>
    %5 = vector.extract_strided_slice %1 {offsets = [3, 0], sizes = [1, 256], strides = [1, 1]} : vector<8x256xf32> to vector<1x256xf32>
    %c1_i32 = arith.constant 1 : i32
    %6 = tpu.dynamic_rotate %0 by %c1_i32 dim 1 : vector<8x256xf32>, i32 -> vector<8x256xf32>
    %7 = vector.broadcast %2 : vector<1x256xf32> to vector<8x256xf32>
    %8 = arith.mulf %6, %7 : vector<8x256xf32>
    %c255_i32 = arith.constant 255 : i32
    %9 = tpu.dynamic_rotate %0 by %c255_i32 dim 1 : vector<8x256xf32>, i32 -> vector<8x256xf32>
    %10 = vector.broadcast %3 : vector<1x256xf32> to vector<8x256xf32>
    %11 = arith.mulf %9, %10 : vector<8x256xf32>
    %12 = arith.subf %11, %8 : vector<8x256xf32>
    %13 = arith.addf %0, %0 : vector<8x256xf32>
    %14 = arith.addf %8, %11 : vector<8x256xf32>
    %15 = arith.addf %13, %14 : vector<8x256xf32>
    %c16_i32 = arith.constant 16 : i32
    %16 = tpu.dynamic_rotate %12 by %c16_i32 dim 1 : vector<8x256xf32>, i32 -> vector<8x256xf32>
    %17 = vector.broadcast %4 : vector<1x256xf32> to vector<8x256xf32>
    %18 = arith.mulf %16, %17 : vector<8x256xf32>
    %19 = arith.addf %12, %12 : vector<8x256xf32>
    %20 = arith.addf %18, %19 : vector<8x256xf32>
    %c240_i32 = arith.constant 240 : i32
    %21 = tpu.dynamic_rotate %12 by %c240_i32 dim 1 : vector<8x256xf32>, i32 -> vector<8x256xf32>
    %22 = vector.broadcast %5 : vector<1x256xf32> to vector<8x256xf32>
    %23 = arith.mulf %21, %22 : vector<8x256xf32>
    %24 = arith.addf %20, %23 : vector<8x256xf32>
    %c240_i32_3 = arith.constant 240 : i32
    %25 = tpu.dynamic_rotate %15 by %c240_i32_3 dim 1 : vector<8x256xf32>, i32 -> vector<8x256xf32>
    %26 = vector.broadcast %5 : vector<1x256xf32> to vector<8x256xf32>
    %27 = arith.mulf %25, %26 : vector<8x256xf32>
    %c16_i32_4 = arith.constant 16 : i32
    %28 = tpu.dynamic_rotate %15 by %c16_i32_4 dim 1 : vector<8x256xf32>, i32 -> vector<8x256xf32>
    %29 = vector.broadcast %4 : vector<1x256xf32> to vector<8x256xf32>
    %30 = arith.mulf %28, %29 : vector<8x256xf32>
    %31 = arith.subf %27, %30 : vector<8x256xf32>
    %32 = arith.mulf %24, %24 : vector<8x256xf32>
    %33 = arith.mulf %31, %31 : vector<8x256xf32>
    %34 = arith.addf %32, %33 : vector<8x256xf32>
    %cst = arith.constant 9.99999997E-7 : f32
    %35 = vector.broadcast %cst : f32 to vector<8x256xf32>
    %36 = arith.addf %34, %35 : vector<8x256xf32>
    %37 = math.sqrt %36 : vector<8x256xf32>
    %c0_5 = arith.constant 0 : index
    %c0_6 = arith.constant 0 : index
    %38 = vector.load %arg3[%c0_5, %c0_6] : memref<8x256xf32, #tpu.memory_space<vmem>>, vector<8x256xf32>
    tpu.vector_store %arg3[%c0_5, %c0_6], %37 {strides = array<i32>} : memref<8x256xf32, #tpu.memory_space<vmem>>, vector<8x256xf32>,
    return
  }
  func.func @transform_0(%arg0: i32) -> (i32, i32) {
    %c0_i32 = arith.constant 0 : i32
    %c0_i32_0 = arith.constant 0 : i32
    return %arg0, %c0_i32 : i32, i32
  }
  func.func @transform_1(%arg0: i32) -> (i32, i32) {
    %c0_i32 = arith.constant 0 : i32
    %c0_i32_0 = arith.constant 0 : i32
    %c0_i32_1 = arith.constant 0 : i32
    return %c0_i32, %c0_i32_0 : i32, i32
  }
  func.func @transform_2(%arg0: i32) -> (i32, i32) {
    %c0_i32 = arith.constant 0 : i32
    %c0_i32_0 = arith.constant 0 : i32
    return %arg0, %c0_i32 : i32, i32
  }
}

</mosaic_0001>

<llo_original>
// kernel: tpu_custom_call.1
$region0: #{tpu_custom_call.1}
  #allocation0 [shape = 'u32[]', space=smem, size = 0x4, offset = 0x4, fixed_abs, tag = 'smem constant byte address 0x4 - core index']
  #allocation1 [shape = 'u32[72,128]{1,0:T(1,128)}', space=vmem, size = 0x9000, scoped, tag = 'internal scratch']
  %s0 = inlined_call_operand.hbm [shape: f32[8,256], index: 0, kind: input, shape index: {}]
  %s1 = inlined_call_operand.hbm [shape: f32[8,256], index: 1, kind: input, shape index: {}]
  %s2 = inlined_call_operand.hbm [shape: f32[8,256], index: 2, kind: output, shape index: {}]
  %s3 = sld [smem:[#allocation0]]
  $region26: #{tpu_custom_call.1} parent=0
    _
  %s5 = ssub.s32 1, %s3
  %s6 = scalar_select 0, %s5, %s3
  $region1: #{tpu_custom_call.1} parent=0
    #allocation2 [shape = 'u8[8192]{0}', space=vmem, size = 0x2000, scoped, tag = 'input window, operand 0, single buffered']
    #allocation3 [shape = 's32[1]{0}', space=sflag, size = 0x4, scoped, tag = 'scoped memory for tpu_custom_call.1']
    #allocation4 [shape = 's32[1]{0}', space=sflag, size = 0x4, scoped, tag = 'scoped memory for tpu_custom_call.1']
    #allocation5 [shape = 'u8[8192]{0}', space=vmem, size = 0x2000, scoped, tag = 'input window, operand 1, single buffered']
    #allocation6 [shape = 's32[1]{0}', space=sflag, size = 0x4, scoped, tag = 'scoped memory for tpu_custom_call.1']
    #allocation7 [shape = 'u8[8192]{0}', space=vmem, size = 0x2000, scoped, tag = 'output window, operand 0, single buffered']
    %7 = vsyncpa [#allocation3], 0
    %8 = vsyncpa [#allocation6], 0
    %9 = vsyncpa [#allocation4], 0
    // Predicated region
    $region2: #{tpu_custom_call.1} parent=1 // pred_check
      _
    $region3: #{tpu_custom_call.1} parent=1 // pred_check_branch
      %11 = sbr.rel (0) target = $region5
    $region4: #{tpu_custom_call.1} parent=1 // pred_region
      %13 = vsyncadd [#allocation3], 0
      %s15 = sshll.u32 %s0, 4
      %s16 = int_to_ptr.hbm [resolvable:$true] %s15
      %s17 = sshll.u32 [#allocation2], 4
      %s18 = int_to_ptr.vmem [resolvable:$true] %s17
      %20 = dma.hbm_to_vmem [thread:$0]  %s16, 256, %s18, [#allocation3]
    $region5: #{tpu_custom_call.1} parent=1 // pred_fallthru
      _
    // Predicated region
    $region6: #{tpu_custom_call.1} parent=1 // pred_check
      _
    $region7: #{tpu_custom_call.1} parent=1 // pred_check_branch
      %22 = sbr.rel (0) target = $region9
    $region8: #{tpu_custom_call.1} parent=1 // pred_region
      %24 = vsyncadd [#allocation6], 0
      %s26 = sshll.u32 %s1, 4
      %s27 = int_to_ptr.hbm [resolvable:$true] %s26
      %s28 = sshll.u32 [#allocation5], 4
      %s29 = int_to_ptr.vmem [resolvable:$true] %s28
      %31 = dma.hbm_to_vmem [thread:$0]  %s27, 256, %s29, [#allocation6]
    $region9: #{tpu_custom_call.1} parent=1 // pred_fallthru
      _
    // Predicated region
    $region10: #{tpu_custom_call.1} parent=1 // pred_check
      _
    $region11: #{tpu_custom_call.1} parent=1 // pred_check_branch
      %33 = sbr.rel (0) target = $region13
    $region12: #{tpu_custom_call.1} parent=1 // pred_region
      %35 = dma.done [#allocation3], 256
    $region13: #{tpu_custom_call.1} parent=1 // pred_fallthru
      _
    // Predicated region
    $region14: #{tpu_custom_call.1} parent=1 // pred_check
      _
    $region15: #{tpu_custom_call.1} parent=1 // pred_check_branch
      %37 = sbr.rel (0) target = $region17
    $region16: #{tpu_custom_call.1} parent=1 // pred_region
      %39 = dma.done [#allocation6], 256
    $region17: #{tpu_custom_call.1} parent=1 // pred_fallthru
      _
    %v40 = vld [vmem:[#allocation2] sm:$0xff]
    %v41 = vld [vmem:[#allocation2 + $0x8] sm:$0xff]
    %v42 = vld [vmem:[#allocation5] sm:$0xff]
    %v43 = vld [vmem:[#allocation5 + $0x8] sm:$0xff]
    %44 = vrot.lane.b32.xlu0 %v40, 1
    %v45 = vpop.permute.xlu0 %44
    %46 = vrot.lane.b32.xlu0 %v41, 1
    %v47 = vpop.permute.xlu0 %46
    %v48 = vlaneseq
    %v49 = vand.u32 %v48, 127
    %vm50 = vcmp.lt.s32.totalorder %v49, 1
    %v51 = vsel %vm50, %v45, %v47
    %v52 = vsel %vm50, %v47, %v45
    %v53 = vperm.slane %v42, 0
    %v54 = vperm.slane %v43, 0
    %v55 = vmul.f32 %v52, %v53
    %v56 = vmul.f32 %v51, %v54
    %57 = vrot.lane.b32.xlu0 %v40, 127
    %v58 = vpop.permute.xlu0 %57
    %59 = vrot.lane.b32.xlu0 %v41, 127
    %v60 = vpop.permute.xlu0 %59
    %vm61 = vcmp.lt.s32.totalorder %v49, 127
    %v62 = vsel %vm61, %v58, %v60
    %v63 = vsel %vm61, %v60, %v58
    %v64 = vperm.slane %v42, 1
    %v65 = vperm.slane %v43, 1
    %v66 = vmul.f32 %v62, %v64
    %v67 = vmul.f32 %v63, %v65
    %v68 = vsub.f32 %v66, %v55
    %v69 = vsub.f32 %v67, %v56
    %v70 = vadd.f32 %v40, %v40
    %v71 = vadd.f32 %v41, %v41
    %v72 = vadd.f32 %v55, %v66
    %v73 = vadd.f32 %v56, %v67
    %v74 = vadd.f32 %v70, %v72
    %v75 = vadd.f32 %v71, %v73
    %76 = vrot.lane.b32.xlu0 %v68, 16
    %v77 = vpop.permute.xlu0 %76
    %78 = vrot.lane.b32.xlu0 %v69, 16
    %v79 = vpop.permute.xlu0 %78
    %vm80 = vcmp.lt.s32.totalorder %v49, 16
    %v81 = vsel %vm80, %v77, %v79
    %v82 = vsel %vm80, %v79, %v77
    %v83 = vperm.slane %v42, 2
    %v84 = vperm.slane %v43, 2
    %v85 = vmul.f32 %v82, %v83
    %v86 = vmul.f32 %v81, %v84
    %v87 = vadd.f32 %v68, %v68
    %v88 = vadd.f32 %v69, %v69
    %v89 = vadd.f32 %v85, %v87
    %v90 = vadd.f32 %v86, %v88
    %91 = vrot.lane.b32.xlu0 %v68, 112
    %v92 = vpop.permute.xlu0 %91
    %93 = vrot.lane.b32.xlu0 %v69, 112
    %v94 = vpop.permute.xlu0 %93
    %vm95 = vcmp.lt.s32.totalorder %v49, 112
    %v96 = vsel %vm95, %v92, %v94
    %v97 = vsel %vm95, %v94, %v92
    %v98 = vperm.slane %v42, 3
    %v99 = vperm.slane %v43, 3
    %v100 = vmul.f32 %v96, %v98
    %v101 = vmul.f32 %v97, %v99
    %v102 = vadd.f32 %v89, %v100
    %v103 = vadd.f32 %v90, %v101
    %104 = vrot.lane.b32.xlu0 %v74, 112
    %v105 = vpop.permute.xlu0 %104
    %106 = vrot.lane.b32.xlu0 %v75, 112
    %v107 = vpop.permute.xlu0 %106
    %v108 = vsel %vm95, %v105, %v107
    %v109 = vsel %vm95, %v107, %v105
    %v110 = vmul.f32 %v108, %v98
    %v111 = vmul.f32 %v109, %v99
    %112 = vrot.lane.b32.xlu0 %v74, 16
    %v113 = vpop.permute.xlu0 %112
    %114 = vrot.lane.b32.xlu0 %v75, 16
    %v115 = vpop.permute.xlu0 %114
    %v116 = vsel %vm80, %v113, %v115
    %v117 = vsel %vm80, %v115, %v113
    %v118 = vmul.f32 %v117, %v83
    %v119 = vmul.f32 %v116, %v84
    %v120 = vsub.f32 %v110, %v118
    %v121 = vsub.f32 %v111, %v119
    %v122 = vmul.f32 %v102, %v102
    %v123 = vmul.f32 %v103, %v103
    %v124 = vmul.f32 %v120, %v120
    %v125 = vmul.f32 %v121, %v121
    %v126 = vadd.f32 %v122, %v124
    %v127 = vadd.f32 %v123, %v125
    %v128 = vadd.f32 %v126, 1e-06
    %v129 = vadd.f32 %v127, 1e-06
    %v130 = vrsqrt.pop %v128
    %v131 = vmul.f32 %v130, %v128
    %v132 = vmul.f32 %v131, %v130
    %v133 = vmul.f32 0.5, %v132
    %v134 = vsub.f32 1.5, %v133
    %v135 = vmul.f32 %v130, %v134
    %v136 = vmul.f32 %v128, %v135
    %vm137 = vcmp.eq.f32.partialorder %v128, inf
    %v138 = vsel %vm137, %v128, %v136
    %vm139 = vcmp.eq.f32.partialorder %v128, 0.0
    %v140 = vand.u32 %v128, 2147483648
    %v141 = vsel %vm139, %v140, %v138
    %v142 = vrsqrt.pop %v129
    %v143 = vmul.f32 %v142, %v129
    %v144 = vmul.f32 %v143, %v142
    %v145 = vmul.f32 0.5, %v144
    %v146 = vsub.f32 1.5, %v145
    %v147 = vmul.f32 %v142, %v146
    %v148 = vmul.f32 %v129, %v147
    %vm149 = vcmp.eq.f32.partialorder %v129, inf
    %v150 = vsel %vm149, %v129, %v148
    %vm151 = vcmp.eq.f32.partialorder %v129, 0.0
    %v152 = vand.u32 %v129, 2147483648
    %v153 = vsel %vm151, %v152, %v150
    %154 = vst [vmem:[#allocation7] sm:$0xff] %v141
    %155 = vst [vmem:[#allocation7 + $0x8] sm:$0xff] %v153
    // Predicated region
    $region18: #{tpu_custom_call.1} parent=1 // pred_check
      _
    $region19: #{tpu_custom_call.1} parent=1 // pred_check_branch
      %157 = sbr.rel (0) target = $region21
    $region20: #{tpu_custom_call.1} parent=1 // pred_region
      %159 = vsyncadd [#allocation4], 0
      %s161 = sshll.u32 [#allocation7], 4
      %s162 = int_to_ptr.vmem [resolvable:$true] %s161
      %s163 = sshll.u32 %s2, 4
      %s164 = int_to_ptr.hbm [resolvable:$true] %s163
      %166 = dma.vmem_to_hbm [thread:$0]  %s162, 256, %s164, [#allocation4]
    $region21: #{tpu_custom_call.1} parent=1 // pred_fallthru
      _
    // Predicated region
    $region22: #{tpu_custom_call.1} parent=1 // pred_check
      _
    $region23: #{tpu_custom_call.1} parent=1 // pred_check_branch
      %168 = sbr.rel (0) target = $region25
    $region24: #{tpu_custom_call.1} parent=1 // pred_region
      %170 = dma.done [#allocation4], 256
    $region25: #{tpu_custom_call.1} parent=1 // pred_fallthru
      _
    %171 = vsyncpa [#allocation3], 1
    %172 = vsyncpa [#allocation6], 1
    %173 = vsyncpa [#allocation4], 1

</llo_original>
